<compile_context>
chip_gen: v5e
topology: v5e:2x2
jax: 0.10.0
libtpu: 0.0.40
codegen_flags: <defaults>
</compile_context>

<pallas_src>
import functools

import jax
import jax.numpy as jnp
from jax.experimental import pallas as pl
from jax.experimental.pallas import tpu as pltpu


def _round_up(x, m):
    return (x + m - 1) // m * m


def _vmem_capacity_bytes():
    """Generation-aware physical VMEM capacity; conservative fallback."""
    try:
        return int(pltpu.get_tpu_info().vmem_capacity_bytes)
    except Exception:
        return 64 * 1024 * 1024  # v7x per-TC worst case


def _seq_label_so_kernel(x_ref, w1_ref, b1_ref, wso_ref, bso_ref, out_ref, *,
                         compute_dtype):
    # x_ref:   (tm, hidden)       tile of flattened input rows (producer dtype)
    # w1_ref:  (hidden, half)     b1_ref:  (1, half)       [bias f32]
    # wso_ref: (half, out_pad)    bso_ref: (1, out_pad)    [Ws|Wo fused, zero-
    #                              padded columns up to a 128 multiple]
    # out_ref: (tm, out_pad)      lane-dense fused output tile
    #
    # Cast x to the MXU operand dtype in-kernel (VPU work hidden under DMA/MXU)
    # instead of a separate wrapper-side XLA cast pass over HBM.
    x = x_ref[...].astype(compute_dtype)

    # Linear + bias + ReLU.  MXU matmul accumulates in f32; bias add and ReLU
    # stay in f32 on the VPU regardless of the operand dtype.
    h = jnp.dot(x, w1_ref[...], preferred_element_type=jnp.float32) + b1_ref[...]
    h = jnp.maximum(h, 0.0)

    # TODO(synk): nn.Dropout is stochastic at train time; eval-mode (identity)
    # semantics are implemented here.

    # Fused sub|obj projection: one matmul, one unmasked lane-dense store.
    out_ref[...] = (jnp.dot(h.astype(wso_ref.dtype), wso_ref[...],
                            preferred_element_type=jnp.float32)
                    + bso_ref[...]).astype(out_ref.dtype)


@functools.partial(jax.jit, static_argnames=("tm", "compute_dtype", "out_dtype"))
def sequence_label_for_so(input_features, params, *, tm=1024,
                          compute_dtype=jnp.float32, out_dtype=jnp.float32):
    """input_features: [batch, seq, hidden].

    Returns (sub, obj), each [batch, seq, tag_size] with dtype `out_dtype`.
    `compute_dtype=jnp.bfloat16` uses bf16 MXU operands (valid on v5e/v6e/v7x);
    accumulation, bias add and ReLU stay in f32.
    """
    w1, b1, ws, bs, wo, bo = (params["w1"], params["b1"], params["ws"],
                              params["bs"], params["wo"], params["bo"])
    B, S, H = input_features.shape
    half = w1.shape[1]
    tag = ws.shape[1]
    M = B * S
    out_pad = _round_up(2 * tag, 128)       # lane-dense fused output width

    x_bytes = input_features.dtype.itemsize
    op_bytes = jnp.dtype(compute_dtype).itemsize
    out_bytes = jnp.dtype(out_dtype).itemsize

    # ---- generation-aware VMEM budget and VMEM-aware row tile ----
    vmem_cap = _vmem_capacity_bytes()
    vmem_budget = min(int(vmem_cap * 0.75), 100 * 1024 * 1024)

    # Resident weights/biases (default double-buffered even though their block
    # index never changes — accounted at 2x).
    fixed_bytes = (2 * (H * half + half * out_pad) * op_bytes
                   + 2 * (half + out_pad) * 4)
    # Per-row VMEM: double-buffered x tile, double-buffered out tile, the f32
    # intermediate h, plus in-kernel cast copies when compute_dtype differs.
    row_bytes = 2 * H * x_bytes + 2 * out_pad * out_bytes + half * 4
    if jnp.dtype(compute_dtype) != input_features.dtype:
        row_bytes += H * op_bytes           # in-kernel cast copy of x
    if op_bytes != 4:
        row_bytes += half * op_bytes        # bf16 cast copy of h

    tm_vmem = max(((vmem_budget - fixed_bytes) // row_bytes) // 8 * 8, 8)

    # Keep >= 2 grid steps when M allows (feeds both v7x TensorCores with the
    # "parallel" row axis and gives the pipeline something to overlap).
    tm_split = _round_up(pl.cdiv(M, 2), 8)

    tm_eff = int(max(8, min(_round_up(tm, 8), tm_vmem, tm_split)))
    grid = (pl.cdiv(M, tm_eff),)            # ragged last block handled by Pallas

    # ---- wrapper-side data prep (tiny weight plumbing only; x untouched) ----
    x2d = input_features.reshape(M, H)

    w1c = w1.astype(compute_dtype)
    b1_2d = b1.reshape(1, half).astype(jnp.float32)

    # Fuse Ws|Wo -> (half, 2*tag), pad with zero columns to out_pad lanes.
    wso = jnp.concatenate([ws, wo], axis=1)
    wso = jnp.pad(wso, ((0, 0), (0, out_pad - 2 * tag))).astype(compute_dtype)
    bso = jnp.concatenate([bs, bo], axis=0).reshape(1, 2 * tag)
    bso = jnp.pad(bso, ((0, 0), (0, out_pad - 2 * tag))).astype(jnp.float32)

    in_specs = [
        pl.BlockSpec((tm_eff, H), lambda i: (i, 0)),       # x tile
        pl.BlockSpec((H, half), lambda i: (0, 0)),         # W1 (resident)
        pl.BlockSpec((1, half), lambda i: (0, 0)),         # b1
        pl.BlockSpec((half, out_pad), lambda i: (0, 0)),   # Ws|Wo fused
        pl.BlockSpec((1, out_pad), lambda i: (0, 0)),      # bs|bo fused
    ]
    out_specs = pl.BlockSpec((tm_eff, out_pad), lambda i: (i, 0))

    kernel_vmem = fixed_bytes + tm_eff * row_bytes
    vmem_limit = int(min(max(int(kernel_vmem * 1.5), 32 * 1024 * 1024),
                         vmem_budget))

    cost = pl.CostEstimate(
        flops=2 * M * H * half + 2 * M * half * out_pad,
        transcendentals=0,
        bytes_accessed=(M * H * x_bytes
                        + (H * half + half * out_pad) * op_bytes
                        + (half + out_pad) * 4
                        + M * out_pad * out_bytes),
    )

    out2d = pl.pallas_call(
        functools.partial(_seq_label_so_kernel, compute_dtype=compute_dtype),
        out_shape=jax.ShapeDtypeStruct((M, out_pad), out_dtype),
        grid_spec=pltpu.PrefetchScalarGridSpec(
            num_scalar_prefetch=0,
            grid=grid,
            in_specs=in_specs,
            out_specs=out_specs,
        ),
        compiler_params=pltpu.CompilerParams(
            dimension_semantics=("parallel",),
            vmem_limit_bytes=vmem_limit,
        ),
        cost_estimate=cost,
    )(x2d, w1c, b1_2d, wso, bso)

    # Single contiguous slice of the useful lanes, then split sub/obj.
    fused = out2d[:, :2 * tag].reshape(B, S, 2 * tag)
    sub = fused[..., :tag]
    obj = fused[..., tag:]
    return sub, obj


def init_params(key, hidden_size, tag_size):
    """Deterministic synthetic params matching SequenceLabelForSO.__init__."""
    half = hidden_size // 2
    k1, k2, k3, k4, k5, k6 = jax.random.split(key, 6)
    scale1 = 1.0 / jnp.sqrt(hidden_size)
    scale2 = 1.0 / jnp.sqrt(half)
    return {
        # stored as [in, out] (transpose of torch nn.Linear.weight)
        "w1": jax.random.uniform(k1, (hidden_size, half), jnp.float32,
                                 -scale1, scale1),
        "b1": jax.random.uniform(k2, (half,), jnp.float32, -scale1, scale1),
        "ws": jax.random.uniform(k3, (half, tag_size), jnp.float32,
                                 -scale2, scale2),
        "bs": jax.random.uniform(k4, (tag_size,), jnp.float32, -scale2, scale2),
        "wo": jax.random.uniform(k5, (half, tag_size), jnp.float32,
                                 -scale2, scale2),
        "bo": jax.random.uniform(k6, (tag_size,), jnp.float32, -scale2, scale2),
    }


def _reference(input_features, params):
    h = jnp.maximum(
        jnp.einsum("bsh,hk->bsk", input_features, params["w1"]) + params["b1"],
        0.0)
    sub = jnp.einsum("bsk,kt->bst", h, params["ws"]) + params["bs"]
    obj = jnp.einsum("bsk,kt->bst", h, params["wo"]) + params["bo"]
    return sub, obj


if __name__ == "__main__":
    hidden, tag_size = 32, 5
    key = jax.random.PRNGKey(0)
    k_x, k_p, k_x2 = jax.random.split(key, 3)
    params = init_params(k_p, hidden, tag_size)

    # Case 1: batch=2, seq=8 (M=16 -> 2 grid steps), f32 operands.
    x = jax.random.normal(k_x, (2, 8, hidden), jnp.float32)
    sub, obj = sequence_label_for_so(x, params)
    jax.block_until_ready((sub, obj))
    sub_ref, obj_ref = _reference(x, params)
    assert sub.shape == (2, 8, tag_size) and obj.shape == (2, 8, tag_size)
    assert jnp.allclose(sub, sub_ref, atol=1e-5, rtol=1e-5)
    assert jnp.allclose(obj, obj_ref, atol=1e-5, rtol=1e-5)

    # Case 2: ragged row count (batch=3, seq=7 -> M=21, ragged last block).
    x2 = jax.random.normal(k_x2, (3, 7, hidden), jnp.float32)
    sub2, obj2 = sequence_label_for_so(x2, params)
    jax.block_until_ready((sub2, obj2))
    sub2_ref, obj2_ref = _reference(x2, params)
    assert sub2.shape == (3, 7, tag_size) and obj2.shape == (3, 7, tag_size)
    assert jnp.allclose(sub2, sub2_ref, atol=1e-5, rtol=1e-5)
    assert jnp.allclose(obj2, obj2_ref, atol=1e-5, rtol=1e-5)

    # Case 3: bf16 MXU operands (in-kernel cast of x); looser tolerance.
    sub3, obj3 = sequence_label_for_so(x, params, compute_dtype=jnp.bfloat16)
    jax.block_until_ready((sub3, obj3))
    assert jnp.allclose(sub3, sub_ref, atol=3e-2, rtol=3e-2)
    assert jnp.allclose(obj3, obj_ref, atol=3e-2, rtol=3e-2)

    print("KERNEL_OK")
</pallas_src>

<mosaic_0001>
module attributes {stable_mosaic.version = 11 : i64} {
  func.func @_seq_label_so_kernel(%arg0: i32, %arg1: memref<8x32xf32, #tpu.memory_space<vmem>>, %arg2: memref<32x16xf32, #tpu.memory_space<vmem>>, %arg3: memref<1x16xf32, #tpu.memory_space<vmem>>, %arg4: memref<16x128xf32, #tpu.memory_space<vmem>>, %arg5: memref<1x128xf32, #tpu.memory_space<vmem>>, %arg6: memref<8x128xf32, #tpu.memory_space<vmem>>) attributes {dimension_semantics = [#tpu.dimension_semantics<parallel>], iteration_bounds = array<i64: 2>, scalar_prefetch = 0 : i64, scratch_operands = 0 : i64, tpu.core_type = #tpu.core_type<tc>, window_params = [{transform_indices = @transform_0, window_bounds = array<i64: 8, 32>}, {pipeline_mode = #tpu.pipeline_mode<synchronous>, transform_indices = @transform_1, window_bounds = array<i64: 32, 16>}, {pipeline_mode = #tpu.pipeline_mode<synchronous>, transform_indices = @transform_2, window_bounds = array<i64: 1, 16>}, {pipeline_mode = #tpu.pipeline_mode<synchronous>, transform_indices = @transform_3, window_bounds = array<i64: 16, 128>}, {pipeline_mode = #tpu.pipeline_mode<synchronous>, transform_indices = @transform_4, window_bounds = array<i64: 1, 128>}, {transform_indices = @transform_5, window_bounds = array<i64: 8, 128>}]} {
    %c0 = arith.constant 0 : index
    %c0_0 = arith.constant 0 : index
    %0 = vector.load %arg1[%c0, %c0_0] : memref<8x32xf32, #tpu.memory_space<vmem>>, vector<8x32xf32>
    %c0_1 = arith.constant 0 : index
    %c0_2 = arith.constant 0 : index
    %1 = vector.load %arg2[%c0_1, %c0_2] : memref<32x16xf32, #tpu.memory_space<vmem>>, vector<32x16xf32>
    %cst = arith.constant dense<0.000000e+00> : vector<8x16xf32>
    %2 = tpu.matmul %0, %1, %cst {dimension_numbers = #tpu.dot_dimension_numbers<[1], [0], [0], [1], [0, 0, 1, 1], [], []>} : vector<8x32xf32>, vector<32x16xf32>, vector<8x16xf32> -> vector<8x16xf32>
    %c0_3 = arith.constant 0 : index
    %c0_4 = arith.constant 0 : index
    %3 = vector.load %arg3[%c0_3, %c0_4] : memref<1x16xf32, #tpu.memory_space<vmem>>, vector<1x16xf32>
    %4 = vector.broadcast %3 : vector<1x16xf32> to vector<8x16xf32>
    %5 = arith.addf %2, %4 : vector<8x16xf32>
    %cst_5 = arith.constant 0.000000e+00 : f32
    %6 = vector.broadcast %cst_5 : f32 to vector<8x16xf32>
    %7 = arith.maximumf %5, %6 : vector<8x16xf32>
    %c0_6 = arith.constant 0 : index
    %c0_7 = arith.constant 0 : index
    %8 = vector.load %arg4[%c0_6, %c0_7] : memref<16x128xf32, #tpu.memory_space<vmem>>, vector<16x128xf32>
    %cst_8 = arith.constant dense<0.000000e+00> : vector<8x128xf32>
    %9 = tpu.matmul %7, %8, %cst_8 {dimension_numbers = #tpu.dot_dimension_numbers<[1], [0], [0], [1], [0, 0, 1, 1], [], []>} : vector<8x16xf32>, vector<16x128xf32>, vector<8x128xf32> -> vector<8x128xf32>
    %c0_9 = arith.constant 0 : index
    %c0_10 = arith.constant 0 : index
    %10 = vector.load %arg5[%c0_9, %c0_10] : memref<1x128xf32, #tpu.memory_space<vmem>>, vector<1x128xf32>
    %11 = vector.broadcast %10 : vector<1x128xf32> to vector<8x128xf32>
    %12 = arith.addf %9, %11 : vector<8x128xf32>
    %c0_11 = arith.constant 0 : index
    %c0_12 = arith.constant 0 : index
    %13 = vector.load %arg6[%c0_11, %c0_12] : memref<8x128xf32, #tpu.memory_space<vmem>>, vector<8x128xf32>
    tpu.vector_store %arg6[%c0_11, %c0_12], %12 {strides = array<i32>} : memref<8x128xf32, #tpu.memory_space<vmem>>, vector<8x128xf32>,
    return
  }
  func.func @transform_0(%arg0: i32) -> (i32, i32) {
    %c0_i32 = arith.constant 0 : i32
    %c0_i32_0 = arith.constant 0 : i32
    return %arg0, %c0_i32 : i32, i32
  }
  func.func @transform_1(%arg0: i32) -> (i32, i32) {
    %c0_i32 = arith.constant 0 : i32
    %c0_i32_0 = arith.constant 0 : i32
    %c0_i32_1 = arith.constant 0 : i32
    return %c0_i32, %c0_i32_0 : i32, i32
  }
  func.func @transform_2(%arg0: i32) -> (i32, i32) {
    %c0_i32 = arith.constant 0 : i32
    %c0_i32_0 = arith.constant 0 : i32
    %c0_i32_1 = arith.constant 0 : i32
    return %c0_i32, %c0_i32_0 : i32, i32
  }
  func.func @transform_3(%arg0: i32) -> (i32, i32) {
    %c0_i32 = arith.constant 0 : i32
    %c0_i32_0 = arith.constant 0 : i32
    %c0_i32_1 = arith.constant 0 : i32
    return %c0_i32, %c0_i32_0 : i32, i32
  }
  func.func @transform_4(%arg0: i32) -> (i32, i32) {
    %c0_i32 = arith.constant 0 : i32
    %c0_i32_0 = arith.constant 0 : i32
    %c0_i32_1 = arith.constant 0 : i32
    return %c0_i32, %c0_i32_0 : i32, i32
  }
  func.func @transform_5(%arg0: i32) -> (i32, i32) {
    %c0_i32 = arith.constant 0 : i32
    %c0_i32_0 = arith.constant 0 : i32
    return %arg0, %c0_i32 : i32, i32
  }
}

</mosaic_0001>

<llo_original>
// kernel: sequence_label_for_so.1
$region0: #{sequence_label_for_so.1}
  #allocation0 [shape = 'u32[]', space=smem, size = 0x4, offset = 0x4, fixed_abs, tag = 'smem constant byte address 0x4 - core index']
  #allocation1 [shape = 'u32[72,128]{1,0:T(1,128)}', space=vmem, size = 0x9000, scoped, tag = 'internal scratch']
  %s0 = inlined_call_operand.vmem [shape: f32[16,32], index: 0, kind: input, shape index: {}]
  %s1 = inlined_call_operand.vmem [shape: f32[32,16], index: 1, kind: input, shape index: {}]
  %s2 = inlined_call_operand.vmem [shape: f32[1,16], index: 2, kind: input, shape index: {}]
  %s3 = inlined_call_operand.vmem [shape: f32[16,128], index: 3, kind: input, shape index: {}]
  %s4 = inlined_call_operand.vmem [shape: f32[1,128], index: 4, kind: input, shape index: {}]
  %s5 = inlined_call_operand.vmem [shape: f32[16,128], index: 5, kind: output, shape index: {}]
  %s6 = sld [smem:[#allocation0]]
  $region53: #{sequence_label_for_so.1} parent=0
    _
  %s8 = ssub.s32 1, %s6
  %s9 = scalar_select 0, %s8, %s6
  loop: start=0, step=1, limit=4
  $region2: #{sequence_label_for_so.1} parent=0 // loop_pre_header
    _
  $region3: #{sequence_label_for_so.1} parent=0 // loop_header
    %s11 = sphi 0, %s15
    %p12 = scmp.ge.s32.totalorder %s11, 4
    %s21 = sphi 0, %s23
    %s24 = sphi 0, %s21
    %s25 = sphi 0, %s24
    %s41 = sphi 0, %s25
    %s45 = sphi 0, %s45
    %s47 = sphi 0, %s45
    %s48 = sphi 0, %s47
    %s62 = sphi 0, %s48
    %s66 = sphi 0, %s66
    %s68 = sphi 0, %s66
    %s69 = sphi 0, %s68
    %s83 = sphi 0, %s69
    %s87 = sphi 0, %s87
    %s89 = sphi 0, %s87
    %s90 = sphi 0, %s89
    %s104 = sphi 0, %s90
    %s108 = sphi 0, %s108
    %s110 = sphi 0, %s108
    %s111 = sphi 0, %s110
    %s125 = sphi 0, %s111
    %s131 = sphi 0, %s133
    %s134 = sphi 0, %s131
    %s135 = sphi 0, %s134
    %s151 = sphi 0, %s135
  $region4: #{sequence_label_for_so.1} parent=0 // loop_header_branch
    %14 = sbr.rel (%p12) target = $region8
  $region5: #{sequence_label_for_so.1} parent=0 // loop_body
    %s16 = ssub.s32 %s11, 1
    %s17 = ssub.s32 %s11, 2
    %s18 = sadd.s32 %s11, 1
    %s19 = ssub.s32 %s11, %s18
    %p20 = scmp.eq.s32.totalorder %s19, 0
    %s22 = sadd.s32 %s21, 1
    %s23 = scalar_select %p20, %s21, %s22
    %p26 = pneg %p20
    %p27 = scmp.eq.s32.totalorder %s11, 1
    %p28 = por %p26, %p27
    %p29 = scmp.ne.s32.totalorder %s21, %s24
    %p30 = scmp.eq.s32.totalorder %s11, 0
    %p31 = por %p29, %p30
    %p32 = scmp.ne.s32.totalorder %s21, %s24
    %p33 = scmp.eq.s32.totalorder %s16, 1
    %p34 = por %p32, %p33
    %p35 = scmp.ne.s32.totalorder %s24, %s25
    %p36 = scmp.eq.s32.totalorder %s16, 0
    %p37 = por %p35, %p36
    %p38 = scmp.ne.s32.totalorder %s24, %s25
    %p39 = scmp.eq.s32.totalorder %s17, 1
    %p40 = por %p38, %p39
    %p42 = scmp.ne.s32.totalorder %s25, %s41
    %p43 = scmp.eq.s32.totalorder %s17, 0
    %p44 = por %p42, %p43
    %s46 = sadd.s32 %s45, 1
    %p49 = scmp.eq.s32.totalorder %s11, 1
    %p50 = scmp.ne.s32.totalorder %s45, %s47
    %p51 = scmp.eq.s32.totalorder %s11, 0
    %p52 = por %p50, %p51
    %p53 = scmp.ne.s32.totalorder %s45, %s47
    %p54 = scmp.eq.s32.totalorder %s16, 1
    %p55 = por %p53, %p54
    %p56 = scmp.ne.s32.totalorder %s47, %s48
    %p57 = scmp.eq.s32.totalorder %s16, 0
    %p58 = por %p56, %p57
    %p59 = scmp.ne.s32.totalorder %s47, %s48
    %p60 = scmp.eq.s32.totalorder %s17, 1
    %p61 = por %p59, %p60
    %p63 = scmp.ne.s32.totalorder %s48, %s62
    %p64 = scmp.eq.s32.totalorder %s17, 0
    %p65 = por %p63, %p64
    %s67 = sadd.s32 %s66, 1
    %p70 = scmp.eq.s32.totalorder %s11, 1
    %p71 = scmp.ne.s32.totalorder %s66, %s68
    %p72 = scmp.eq.s32.totalorder %s11, 0
    %p73 = por %p71, %p72
    %p74 = scmp.ne.s32.totalorder %s66, %s68
    %p75 = scmp.eq.s32.totalorder %s16, 1
    %p76 = por %p74, %p75
    %p77 = scmp.ne.s32.totalorder %s68, %s69
    %p78 = scmp.eq.s32.totalorder %s16, 0
    %p79 = por %p77, %p78
    %p80 = scmp.ne.s32.totalorder %s68, %s69
    %p81 = scmp.eq.s32.totalorder %s17, 1
    %p82 = por %p80, %p81
    %p84 = scmp.ne.s32.totalorder %s69, %s83
    %p85 = scmp.eq.s32.totalorder %s17, 0
    %p86 = por %p84, %p85
    %s88 = sadd.s32 %s87, 1
    %p91 = scmp.eq.s32.totalorder %s11, 1
    %p92 = scmp.ne.s32.totalorder %s87, %s89
    %p93 = scmp.eq.s32.totalorder %s11, 0
    %p94 = por %p92, %p93
    %p95 = scmp.ne.s32.totalorder %s87, %s89
    %p96 = scmp.eq.s32.totalorder %s16, 1
    %p97 = por %p95, %p96
    %p98 = scmp.ne.s32.totalorder %s89, %s90
    %p99 = scmp.eq.s32.totalorder %s16, 0
    %p100 = por %p98, %p99
    %p101 = scmp.ne.s32.totalorder %s89, %s90
    %p102 = scmp.eq.s32.totalorder %s17, 1
    %p103 = por %p101, %p102
    %p105 = scmp.ne.s32.totalorder %s90, %s104
    %p106 = scmp.eq.s32.totalorder %s17, 0
    %p107 = por %p105, %p106
    %s109 = sadd.s32 %s108, 1
    %p112 = scmp.eq.s32.totalorder %s11, 1
    %p113 = scmp.ne.s32.totalorder %s108, %s110
    %p114 = scmp.eq.s32.totalorder %s11, 0
    %p115 = por %p113, %p114
    %p116 = scmp.ne.s32.totalorder %s108, %s110
    %p117 = scmp.eq.s32.totalorder %s16, 1
    %p118 = por %p116, %p117
    %p119 = scmp.ne.s32.totalorder %s110, %s111
    %p120 = scmp.eq.s32.totalorder %s16, 0
    %p121 = por %p119, %p120
    %p122 = scmp.ne.s32.totalorder %s110, %s111
    %p123 = scmp.eq.s32.totalorder %s17, 1
    %p124 = por %p122, %p123
    %p126 = scmp.ne.s32.totalorder %s111, %s125
    %p127 = scmp.eq.s32.totalorder %s17, 0
    %p128 = por %p126, %p127
    %s129 = ssub.s32 %s11, %s18
    %p130 = scmp.eq.s32.totalorder %s129, 0
    %s132 = sadd.s32 %s131, 1
    %s133 = scalar_select %p130, %s131, %s132
    %p136 = pneg %p130
    %p137 = scmp.eq.s32.totalorder %s11, 1
    %p138 = por %p136, %p137
    %p139 = scmp.ne.s32.totalorder %s131, %s134
    %p140 = scmp.eq.s32.totalorder %s11, 0
    %p141 = por %p139, %p140
    %p142 = scmp.ne.s32.totalorder %s131, %s134
    %p143 = scmp.eq.s32.totalorder %s16, 1
    %p144 = por %p142, %p143
    %p145 = scmp.ne.s32.totalorder %s134, %s135
    %p146 = scmp.eq.s32.totalorder %s16, 0
    %p147 = por %p145, %p146
    %p148 = scmp.ne.s32.totalorder %s134, %s135
    %p149 = scmp.eq.s32.totalorder %s17, 1
    %p150 = por %p148, %p149
    %p152 = scmp.ne.s32.totalorder %s135, %s151
    %p153 = scmp.eq.s32.totalorder %s17, 0
    %p154 = por %p152, %p153
    %p155 = scmp.le.s32.totalorder 1, %s11
    %p156 = scmp.lt.s32.totalorder %s11, 3
    %p157 = pnand %p155, %p156
    %p158 = pneg %p157
    // Predicated region
    $region9: #{sequence_label_for_so.1} parent=5 // pred_check
      _
    $region10: #{sequence_label_for_so.1} parent=5 // pred_check_branch
      %160 = sbr.rel (%p157) target = $region12
    $region11: #{sequence_label_for_so.1} parent=5 // pred_region
      %s161 = ssub.s32 %s11, 1
      // Predicated region
      $region13: #{sequence_label_for_so.1} parent=11 // pred_check
        %p162 = pneg %p58
      $region14: #{sequence_label_for_so.1} parent=11 // pred_check_branch
        %164 = sbr.rel (%p162) target = $region16
      $region15: #{sequence_label_for_so.1} parent=11 // pred_region
        _
      $region16: #{sequence_label_for_so.1} parent=11 // pred_fallthru
        _
      // Predicated region
      $region17: #{sequence_label_for_so.1} parent=11 // pred_check
        %p165 = pneg %p79
      $region18: #{sequence_label_for_so.1} parent=11 // pred_check_branch
        %167 = sbr.rel (%p165) target = $region20
      $region19: #{sequence_label_for_so.1} parent=11 // pred_region
        _
      $region20: #{sequence_label_for_so.1} parent=11 // pred_fallthru
        _
      // Predicated region
      $region21: #{sequence_label_for_so.1} parent=11 // pred_check
        %p168 = pneg %p100
      $region22: #{sequence_label_for_so.1} parent=11 // pred_check_branch
        %170 = sbr.rel (%p168) target = $region24
      $region23: #{sequence_label_for_so.1} parent=11 // pred_region
        _
      $region24: #{sequence_label_for_so.1} parent=11 // pred_fallthru
        _
      // Predicated region
      $region25: #{sequence_label_for_so.1} parent=11 // pred_check
        %p171 = pneg %p121
      $region26: #{sequence_label_for_so.1} parent=11 // pred_check_branch
        %173 = sbr.rel (%p171) target = $region28
      $region27: #{sequence_label_for_so.1} parent=11 // pred_region
        _
      $region28: #{sequence_label_for_so.1} parent=11 // pred_fallthru
        _
    $region12: #{sequence_label_for_so.1} parent=5 // pred_fallthru
      _
    %p174 = scmp.lt.s32.totalorder %s11, 2
    // Predicated region
    $region29: #{sequence_label_for_so.1} parent=5 // pred_check
      %p175 = pneg %p174
    $region30: #{sequence_label_for_so.1} parent=5 // pred_check_branch
      %177 = sbr.rel (%p175) target = $region32
    $region31: #{sequence_label_for_so.1} parent=5 // pred_region
      // Predicated region
      $region33: #{sequence_label_for_so.1} parent=31 // pred_check
        %p178 = pneg %p31
      $region34: #{sequence_label_for_so.1} parent=31 // pred_check_branch
        %180 = sbr.rel (%p178) target = $region36
      $region35: #{sequence_label_for_so.1} parent=31 // pred_region
        %p181 = scmp.lt.s32.totalorder %s11, 1
        %s182 = scalar_select %p181, %s11, 1
        %s183 = smul.addr %s182, 8
        %s184 = scalar_lea.vmem %s0, %s183
      $region36: #{sequence_label_for_so.1} parent=31 // pred_fallthru
        _
    $region32: #{sequence_label_for_so.1} parent=5 // pred_fallthru
      _
    %p185 = scmp.le.s32.totalorder 1, %s11
    %p186 = scmp.lt.s32.totalorder %s11, 3
    %p187 = pnand %p185, %p186
    %p188 = pneg %p187
    // Predicated region
    $region37: #{sequence_label_for_so.1} parent=5 // pred_check
      _
    $region38: #{sequence_label_for_so.1} parent=5 // pred_check_branch
      %190 = sbr.rel (%p187) target = $region40
    $region39: #{sequence_label_for_so.1} parent=5 // pred_region
      %s191 = ssub.s32 %s11, 1
      %p192 = scmp.lt.s32.totalorder %s16, 1
      %s193 = scalar_select %p192, %s16, 1
      %s194 = smul.addr %s193, 8
      %s195 = scalar_lea.vmem %s0, %s194
      %p196 = pneg %p37
      %p197 = pneg %p34
      %p198 = pneg %p58
      %p199 = pneg %p55
      %p200 = pneg %p79
      %p201 = pneg %p76
      %p202 = pneg %p100
      %p203 = pneg %p97
      %p204 = pneg %p121
      %p205 = pneg %p118
      %p206 = pneg %p147
      %p207 = pneg %p144
      %p208 = scmp.lt.s32.totalorder %s16, 1
      %s209 = scalar_select %p208, %s16, 1
      %s210 = smul.addr %s209, 8
      %s211 = scalar_lea.vmem %s5, %s210
      %p212 = scmp.lt.s32.totalorder %s16, 1
      %s213 = scalar_select %p212, %s16, 1
      %s214 = smul.addr %s213, 8
      %s215 = scalar_lea.vmem %s0, %s214
      %p216 = scmp.lt.s32.totalorder %s16, 1
      %s217 = scalar_select %p216, %s16, 1
      %s218 = smul.addr %s217, 8
      %s219 = scalar_lea.vmem %s5, %s218
      %v220 = vld [vmem:[%s215] sm:$0xff]
      %v221 = vld [vmem:[%s1] sm:$0xff]
      %v222 = vld [vmem:[%s1 + $0x8] sm:$0xff]
      %v223 = vld [vmem:[%s1 + $0x10] sm:$0xff]
      %v224 = vld [vmem:[%s1 + $0x18] sm:$0xff]
      %v225 = vld [vmem:[%s2] sm:$0x1]
      %v227 = vperm.slane %v225, 0
      %vm229 = vcmask 261120
      %v231 = vsel %vm229, %v220, 0
      %233 = vmatpush.msra.mxu0 0.0
      %234 = vmatpush.msra.mxu0 0.0
      %235 = vmatpush.msra.mxu0 0.0
      %236 = vmatpush.msra.mxu0 0.0
      %237 = vmatpush.msra.mxu0 0.0
      %238 = vmatpush.msra.mxu0 0.0
      %239 = vmatpush.msra.mxu0 0.0
      %240 = vmatpush.msra.mxu0 0.0
      %241 = vmatpush.msra.mxu0 0.0
      %242 = vmatpush.msra.mxu0 0.0
      %243 = vmatpush.msra.mxu0 0.0
      %244 = vmatpush.msra.mxu0 0.0
      %245 = vmatpush.msra.mxu0 %v224
      %246 = vmatpush.msra.mxu0 %v223
      %247 = vmatpush.msra.mxu0 %v222
      %248 = vmatpush.msra.mxu0 %v221
      %249 = vmatmul.f32.gmra.mxu0 %v231
      %v250 = vpop.f32.mrf.mxu0
      %v251 = vadd.f32 %v227, %v250
      %252 = vdwg.mxu0
      %v253 = vmax.f32 %v251, 0.0
      %v254 = vld [vmem:[%s3] sm:$0xff]
      %v255 = vld [vmem:[%s3 + $0x8] sm:$0xff]
      %v256 = vld [vmem:[%s4] sm:$0x1]
      %v258 = vperm.slane %v256, 0
      %vm260 = vcmask 130048
      %v262 = vsel %vm260, %v253, 0
      %264 = vmatpush.msra.mxu0 0.0
      %265 = vmatpush.msra.mxu0 0.0
      %266 = vmatpush.msra.mxu0 0.0
      %267 = vmatpush.msra.mxu0 0.0
      %268 = vmatpush.msra.mxu0 0.0
      %269 = vmatpush.msra.mxu0 0.0
      %270 = vmatpush.msra.mxu0 0.0
      %271 = vmatpush.msra.mxu0 0.0
      %272 = vmatpush.msra.mxu0 0.0
      %273 = vmatpush.msra.mxu0 0.0
      %274 = vmatpush.msra.mxu0 0.0
      %275 = vmatpush.msra.mxu0 0.0
      %276 = vmatpush.msra.mxu0 0.0
      %277 = vmatpush.msra.mxu0 0.0
      %278 = vmatpush.msra.mxu0 %v255
      %279 = vmatpush.msra.mxu0 %v254
      %280 = vmatmul.f32.gmra.mxu0 %v262
      %v281 = vpop.f32.mrf.mxu0
      %v282 = vadd.f32 %v258, %v281
      %283 = vdwg.mxu0
      %284 = vst [vmem:[%s219] sm:$0xff] %v282
      %p285 = scmp.lt.s32.totalorder %s16, 1
      %s286 = scalar_select %p285, %s16, 1
      %s287 = smul.addr %s286, 8
      %s288 = scalar_lea.vmem %s5, %s287
      // Predicated region
      $region41: #{sequence_label_for_so.1} parent=39 // pred_check
        %p289 = pneg %p144
      $region42: #{sequence_label_for_so.1} parent=39 // pred_check_branch
        %291 = sbr.rel (%p289) target = $region44
      $region43: #{sequence_label_for_so.1} parent=39 // pred_region
        _
      $region44: #{sequence_label_for_so.1} parent=39 // pred_fallthru
        _
    $region40: #{sequence_label_for_so.1} parent=5 // pred_fallthru
      _
    %p292 = scmp.le.s32.totalorder 2, %s11
    // Predicated region
    $region45: #{sequence_label_for_so.1} parent=5 // pred_check
      %p293 = pneg %p292
    $region46: #{sequence_label_for_so.1} parent=5 // pred_check_branch
      %295 = sbr.rel (%p293) target = $region48
    $region47: #{sequence_label_for_so.1} parent=5 // pred_region
      %s296 = ssub.s32 %s11, 2
      // Predicated region
      $region49: #{sequence_label_for_so.1} parent=47 // pred_check
        %p297 = pneg %p150
      $region50: #{sequence_label_for_so.1} parent=47 // pred_check_branch
        %299 = sbr.rel (%p297) target = $region52
      $region51: #{sequence_label_for_so.1} parent=47 // pred_region
        %p300 = scmp.lt.s32.totalorder %s17, 1
        %s301 = scalar_select %p300, %s17, 1
        %s302 = smul.addr %s301, 8
        %s303 = scalar_lea.vmem %s5, %s302
      $region52: #{sequence_label_for_so.1} parent=47 // pred_fallthru
        _
    $region48: #{sequence_label_for_so.1} parent=5 // pred_fallthru
      _
  $region6: #{sequence_label_for_so.1} parent=0 // loop_footer
    %s15 = sadd.s32 1, %s11
  $region7: #{sequence_label_for_so.1} parent=0 // loop_footer_branch
    %10 = sbr.rel target = $region3
  $region8: #{sequence_label_for_so.1} parent=0 // loop_exit
    _

</llo_original>
